<compile_context>
chip_gen: v7x
topology: tpu7x:2x2x1
jax: 0.10.0
libtpu: 0.0.40
codegen_flags: <defaults>
</compile_context>

<pallas_src>
import jax
import jax.numpy as jnp
from jax.experimental import pallas as pl
from jax.experimental.pallas import tpu as pltpu

_LANES = 128
_SUBLANES = 8


def _make_masked_mae_kernel(total_n, block_rows, needs_tail_mask):
    """Per-block partial-sum kernel.  Only Python scalars are closed over."""
    folds = block_rows // _SUBLANES  # block_rows is always a multiple of 8

    def kernel(p_ref, l_ref, loss_out, mask_out):
        preds = p_ref[...].astype(jnp.float32)
        labels = l_ref[...].astype(jnp.float32)

        # mask = where(isnan(labels), 0, 1): one cmp + one select.
        valid = jnp.where(jnp.isnan(labels), 0.0, 1.0)
        diff = jnp.abs(preds - labels)
        # loss*mask with the reference's where(isnan(loss),0,loss) folded in:
        # any NaN (NaN labels or NaN preds) contributes 0, so the extra
        # `* valid` multiply is redundant and dropped.
        contrib = jnp.where(jnp.isnan(diff), 0.0, diff)

        if needs_tail_mask:
            # Ragged tail: elements whose flat index >= total_n (rows past R
            # in the cdiv-padded last block and/or the <128-element lane pad)
            # hold garbage / zero pad; zero them out of both sums.
            # Compile-time gated, so aligned shapes pay nothing.
            i = pl.program_id(0)
            row = (
                jax.lax.broadcasted_iota(jnp.int32, (block_rows, _LANES), 0)
                + i * block_rows
            )
            full_rows, rem = divmod(total_n, _LANES)
            in_bounds = row < full_rows
            if rem:
                col = jax.lax.broadcasted_iota(
                    jnp.int32, (block_rows, _LANES), 1
                )
                in_bounds = in_bounds | ((row == full_rows) & (col < rem))
            valid = jnp.where(in_bounds, valid, 0.0)
            contrib = jnp.where(in_bounds, contrib, 0.0)

        # Fold the (block_rows, 128) tile down to a single vreg-shaped (8,128)
        # partial with plain VPU adds (no in-kernel cross-lane reduction) and
        # store it lane-dense (unmasked 128-lane stores).
        loss_out[0] = contrib.reshape(folds, _SUBLANES, _LANES).sum(axis=0)
        mask_out[0] = valid.reshape(folds, _SUBLANES, _LANES).sum(axis=0)

    return kernel


def masked_mae(preds, labels, *, max_block_rows=8192):
    assert preds.shape == labels.shape
    total_n = int(preds.size)
    if total_n == 0:
        # torch.mean over an empty tensor is NaN.
        return jnp.float32(jnp.nan)

    # Lane-dense layout: flatten (free) and view as (R, 128).  Padding is only
    # materialized when total_n is not a multiple of 128 (or smaller than one
    # (8,128) tile); padded elements are masked out in-kernel by flat index,
    # so zero padding is fine.
    flat_p = preds.reshape(-1)
    flat_l = labels.reshape(-1)
    padded_len = max(pl.cdiv(total_n, _LANES) * _LANES, _SUBLANES * _LANES)
    pad = padded_len - total_n
    if pad:
        flat_p = jnp.pad(flat_p, (0, pad))
        flat_l = jnp.pad(flat_l, (0, pad))
    p2 = flat_p.reshape(-1, _LANES)
    l2 = flat_l.reshape(-1, _LANES)
    R = p2.shape[0]  # >= 8

    # Largest multiple-of-8 row block up to the cap; the ragged last block
    # (grid = cdiv) is masked in-kernel, so no exact-divisibility search that
    # could degrade to tiny DMAs.  8192 rows x 128 lanes x f32 = 4 MiB per
    # input buffer -> 16 MiB total with 2 inputs x double buffering.
    max_block_rows = max(_SUBLANES, (max_block_rows // _SUBLANES) * _SUBLANES)
    block_rows = min(max_block_rows, (R // _SUBLANES) * _SUBLANES)
    num_blocks = pl.cdiv(R, block_rows)
    needs_tail_mask = (num_blocks * block_rows * _LANES) != total_n

    loss_parts, mask_parts = pl.pallas_call(
        _make_masked_mae_kernel(total_n, block_rows, needs_tail_mask),
        out_shape=(
            jax.ShapeDtypeStruct((num_blocks, _SUBLANES, _LANES), jnp.float32),
            jax.ShapeDtypeStruct((num_blocks, _SUBLANES, _LANES), jnp.float32),
        ),
        grid_spec=pltpu.PrefetchScalarGridSpec(
            num_scalar_prefetch=0,
            grid=(num_blocks,),
            in_specs=[
                pl.BlockSpec((block_rows, _LANES), lambda i: (i, 0)),
                pl.BlockSpec((block_rows, _LANES), lambda i: (i, 0)),
            ],
            out_specs=[
                pl.BlockSpec((1, _SUBLANES, _LANES), lambda i: (i, 0, 0)),
                pl.BlockSpec((1, _SUBLANES, _LANES), lambda i: (i, 0, 0)),
            ],
        ),
        compiler_params=pltpu.CompilerParams(
            # Blocks are independent (no carried accumulator), so the grid
            # axis can be sharded across TensorCores on v7x megacore.
            dimension_semantics=("parallel",),
            vmem_limit_bytes=40 * 1024 * 1024,
        ),
    )(p2, l2)

    # Tiny final reduction + scalar normalization in plain JAX (keeps the
    # kernel free of captured jnp constants and cross-lane reductions).
    sum_loss = jnp.sum(loss_parts)
    sum_valid = jnp.sum(mask_parts)
    total_f = jnp.float32(total_n)
    mean_mask = sum_valid / total_f
    # mask /= mean(mask); 0/0 -> NaN -> 0  ==> result is 0 when no valid labels.
    inv_mean = jnp.where(mean_mask > 0.0, 1.0 / mean_mask, 0.0)
    return (sum_loss * inv_mean) / total_f


def _reference(preds, labels):
    mask = jnp.logical_not(jnp.isnan(labels)).astype(jnp.float32)
    mask = mask / jnp.mean(mask)
    mask = jnp.where(jnp.isnan(mask), 0.0, mask)
    loss = jnp.abs(preds - labels)
    loss = loss * mask
    loss = jnp.where(jnp.isnan(loss), 0.0, loss)
    return jnp.mean(loss)


if __name__ == "__main__":
    key = jax.random.PRNGKey(0)
    k1, k2, k3 = jax.random.split(key, 3)

    # NCHW inputs (batch=2, channels=4, spatial=16x16)
    shape = (2, 4, 16, 16)
    preds = jax.random.normal(k1, shape, dtype=jnp.float32)
    labels = jax.random.normal(k2, shape, dtype=jnp.float32)
    # Punch NaN holes into labels so the mask path is exercised.
    nan_mask = jax.random.bernoulli(k3, p=0.2, shape=shape)
    labels = jnp.where(nan_mask, jnp.nan, labels)

    out = jax.block_until_ready(masked_mae(preds, labels))
    ref = jax.block_until_ready(_reference(preds, labels))

    assert jnp.allclose(out, ref, rtol=1e-5, atol=1e-6), (out, ref)
    print("KERNEL_OK")
</pallas_src>

<mosaic_0001>
module attributes {stable_mosaic.version = 11 : i64} {
  func.func @kernel(%arg0: i32, %arg1: memref<16x128xf32, #tpu.memory_space<vmem>>, %arg2: memref<16x128xf32, #tpu.memory_space<vmem>>, %arg3: memref<1x8x128xf32, #tpu.memory_space<vmem>>, %arg4: memref<1x8x128xf32, #tpu.memory_space<vmem>>) attributes {dimension_semantics = [#tpu.dimension_semantics<parallel>], iteration_bounds = array<i64: 1>, scalar_prefetch = 0 : i64, scratch_operands = 0 : i64, tpu.core_type = #tpu.core_type<tc>, window_params = [{transform_indices = @transform_0, window_bounds = array<i64: 16, 128>}, {transform_indices = @transform_1, window_bounds = array<i64: 16, 128>}, {transform_indices = @transform_2, window_bounds = array<i64: 1, 8, 128>}, {transform_indices = @transform_3, window_bounds = array<i64: 1, 8, 128>}]} {
    %c0 = arith.constant 0 : index
    %c0_0 = arith.constant 0 : index
    %0 = vector.load %arg1[%c0, %c0_0] : memref<16x128xf32, #tpu.memory_space<vmem>>, vector<16x128xf32>
    %c0_1 = arith.constant 0 : index
    %c0_2 = arith.constant 0 : index
    %1 = vector.load %arg2[%c0_1, %c0_2] : memref<16x128xf32, #tpu.memory_space<vmem>>, vector<16x128xf32>
    %2 = arith.cmpf one, %1, %1 : vector<16x128xf32>
    %cst = arith.constant 0.000000e+00 : f32
    %cst_3 = arith.constant 1.000000e+00 : f32
    %3 = vector.broadcast %cst : f32 to vector<16x128xf32>
    %4 = vector.broadcast %cst_3 : f32 to vector<16x128xf32>
    %5 = arith.select %2, %3, %4 : vector<16x128xi1>, vector<16x128xf32>
    %6 = arith.subf %0, %1 : vector<16x128xf32>
    %7 = math.absf %6 : vector<16x128xf32>
    %8 = arith.cmpf one, %7, %7 : vector<16x128xf32>
    %cst_4 = arith.constant 0.000000e+00 : f32
    %9 = vector.broadcast %cst_4 : f32 to vector<16x128xf32>
    %10 = arith.select %8, %9, %7 : vector<16x128xi1>, vector<16x128xf32>
    %11 = vector.shape_cast %10 : vector<16x128xf32> to vector<2x8x128xf32>
    %cst_5 = arith.constant dense<0.000000e+00> : vector<8x128xf32>
    %12 = vector.multi_reduction <add>, %11, %cst_5 [0] : vector<2x8x128xf32> to vector<8x128xf32>
    %c0_6 = arith.constant 0 : index
    %c0_7 = arith.constant 0 : index
    %c0_8 = arith.constant 0 : index
    %13 = vector.load %arg3[%c0_6, %c0_7, %c0_8] : memref<1x8x128xf32, #tpu.memory_space<vmem>>, vector<1x8x128xf32>
    %14 = vector.shape_cast %13 : vector<1x8x128xf32> to vector<8x128xf32>
    %15 = vector.shape_cast %12 : vector<8x128xf32> to vector<1x8x128xf32>
    tpu.vector_store %arg3[%c0_6, %c0_7, %c0_8], %15 {strides = array<i32>} : memref<1x8x128xf32, #tpu.memory_space<vmem>>, vector<1x8x128xf32>,
    %16 = vector.shape_cast %5 : vector<16x128xf32> to vector<2x8x128xf32>
    %cst_9 = arith.constant dense<0.000000e+00> : vector<8x128xf32>
    %17 = vector.multi_reduction <add>, %16, %cst_9 [0] : vector<2x8x128xf32> to vector<8x128xf32>
    %c0_10 = arith.constant 0 : index
    %c0_11 = arith.constant 0 : index
    %c0_12 = arith.constant 0 : index
    %18 = vector.load %arg4[%c0_10, %c0_11, %c0_12] : memref<1x8x128xf32, #tpu.memory_space<vmem>>, vector<1x8x128xf32>
    %19 = vector.shape_cast %18 : vector<1x8x128xf32> to vector<8x128xf32>
    %20 = vector.shape_cast %17 : vector<8x128xf32> to vector<1x8x128xf32>
    tpu.vector_store %arg4[%c0_10, %c0_11, %c0_12], %20 {strides = array<i32>} : memref<1x8x128xf32, #tpu.memory_space<vmem>>, vector<1x8x128xf32>,
    return
  }
  func.func @transform_0(%arg0: i32) -> (i32, i32) {
    %c0_i32 = arith.constant 0 : i32
    %c0_i32_0 = arith.constant 0 : i32
    return %arg0, %c0_i32 : i32, i32
  }
  func.func @transform_1(%arg0: i32) -> (i32, i32) {
    %c0_i32 = arith.constant 0 : i32
    %c0_i32_0 = arith.constant 0 : i32
    return %arg0, %c0_i32 : i32, i32
  }
  func.func @transform_2(%arg0: i32) -> (i32, i32, i32) {
    %c0_i32 = arith.constant 0 : i32
    %c0_i32_0 = arith.constant 0 : i32
    %c0_i32_1 = arith.constant 0 : i32
    return %arg0, %c0_i32, %c0_i32_0 : i32, i32, i32
  }
  func.func @transform_3(%arg0: i32) -> (i32, i32, i32) {
    %c0_i32 = arith.constant 0 : i32
    %c0_i32_0 = arith.constant 0 : i32
    %c0_i32_1 = arith.constant 0 : i32
    return %arg0, %c0_i32, %c0_i32_0 : i32, i32, i32
  }
}

</mosaic_0001>

<llo_original>
// kernel: tpu_custom_call.1
$region0: #{tpu_custom_call.1}
  #allocation0 [shape = 'u32[]', space=smem, size = 0x4, offset = 0x4, fixed_abs, tag = 'smem constant byte address 0x4 - core index']
  #allocation1 [shape = 'u32[144,128]{1,0:T(1,128)}', space=vmem, size = 0x12000, scoped, tag = 'internal scratch']
  %s0 = inlined_call_operand.hbm [shape: f32[16,128], index: 0, kind: input, shape index: {}]
  %s1 = inlined_call_operand.hbm [shape: f32[16,128], index: 1, kind: input, shape index: {}]
  %s2 = inlined_call_operand.hbm [shape: f32[1,8,128], index: 2, kind: output, shape index: {0}]
  %s3 = inlined_call_operand.hbm [shape: f32[1,8,128], index: 3, kind: output, shape index: {1}]
  %4 = xla_tuple %s2, %s3
  %s5 = sld [smem:[#allocation0]]
  $region34: #{tpu_custom_call.1} parent=0
    _
  %s7 = ssub.s32 1, %s5
  %s8 = scalar_select 0, %s7, %s5
  $region1: #{tpu_custom_call.1} parent=0
    #allocation2 [shape = 'u8[8192]{0}', space=vmem, size = 0x2000, scoped, tag = 'input window, operand 0, single buffered']
    #allocation3 [shape = 's32[1]{0}', space=sflag, size = 0x4, scoped, tag = 'scoped memory for tpu_custom_call.1']
    #allocation4 [shape = 's32[1]{0}', space=sflag, size = 0x4, scoped, tag = 'scoped memory for tpu_custom_call.1']
    #allocation5 [shape = 'u8[8192]{0}', space=vmem, size = 0x2000, scoped, tag = 'input window, operand 1, single buffered']
    #allocation6 [shape = 's32[1]{0}', space=sflag, size = 0x4, scoped, tag = 'scoped memory for tpu_custom_call.1']
    #allocation7 [shape = 'u8[4096]{0}', space=vmem, size = 0x1000, scoped, tag = 'output window, operand 0, single buffered']
    #allocation8 [shape = 'u8[4096]{0}', space=vmem, size = 0x1000, scoped, tag = 'output window, operand 1, single buffered']
    #allocation9 [shape = 's32[1]{0}', space=sflag, size = 0x4, scoped, tag = 'scoped memory for tpu_custom_call.1']
    %9 = vsyncpa [#allocation3], 0
    %10 = vsyncpa [#allocation6], 0
    %11 = vsyncpa [#allocation4], 0
    %12 = vsyncpa [#allocation9], 0
    // Predicated region
    $region2: #{tpu_custom_call.1} parent=1 // pred_check
      _
    $region3: #{tpu_custom_call.1} parent=1 // pred_check_branch
      %14 = sbr.rel (0) target = $region5
    $region4: #{tpu_custom_call.1} parent=1 // pred_region
      %s16 = ssub.s32 256, 256
      %17 = vsyncadd [#allocation3], %s16
      %s18 = sshll.u32 [#allocation2], 4
      %s19 = int_to_ptr.vmem [resolvable:$true] %s18
      %24 = dma.hbm_to_vmem [thread:$0]  %s0, 256, %s19, [#allocation3], 128, 128, 8
    $region5: #{tpu_custom_call.1} parent=1 // pred_fallthru
      _
    // Predicated region
    $region6: #{tpu_custom_call.1} parent=1 // pred_check
      _
    $region7: #{tpu_custom_call.1} parent=1 // pred_check_branch
      %26 = sbr.rel (0) target = $region9
    $region8: #{tpu_custom_call.1} parent=1 // pred_region
      %s28 = ssub.s32 256, 256
      %29 = vsyncadd [#allocation6], %s28
      %s30 = sshll.u32 [#allocation5], 4
      %s31 = int_to_ptr.vmem [resolvable:$true] %s30
      %36 = dma.hbm_to_vmem [thread:$0]  %s1, 256, %s31, [#allocation6], 128, 128, 8
    $region9: #{tpu_custom_call.1} parent=1 // pred_fallthru
      _
    // Predicated region
    $region10: #{tpu_custom_call.1} parent=1 // pred_check
      _
    $region11: #{tpu_custom_call.1} parent=1 // pred_check_branch
      %38 = sbr.rel (0) target = $region13
    $region12: #{tpu_custom_call.1} parent=1 // pred_region
      %39 = dma.done [#allocation3], 256
    $region13: #{tpu_custom_call.1} parent=1 // pred_fallthru
      _
    // Predicated region
    $region14: #{tpu_custom_call.1} parent=1 // pred_check
      _
    $region15: #{tpu_custom_call.1} parent=1 // pred_check_branch
      %41 = sbr.rel (0) target = $region17
    $region16: #{tpu_custom_call.1} parent=1 // pred_region
      %42 = dma.done [#allocation6], 256
    $region17: #{tpu_custom_call.1} parent=1 // pred_fallthru
      _
    %v43 = vld [vmem:[#allocation2] sm:$0xff]
    %v44 = vld [vmem:[#allocation2 + $0x8] sm:$0xff]
    %v45 = vld [vmem:[#allocation5] sm:$0xff]
    %v46 = vld [vmem:[#allocation5 + $0x8] sm:$0xff]
    %vm47 = vcmp.ne.f32.partialorder %v45, %v45
    %vm48 = vcmp.ne.f32.partialorder %v46, %v46
    %v49 = vsel %vm47, 0.0, 1.0
    %v50 = vsel %vm48, 0.0, 1.0
    %v51 = vsub.f32 %v43, %v45
    %v52 = vsub.f32 %v44, %v46
    %v53 = vand.u32 2147483647, %v51
    %v54 = vand.u32 2147483647, %v52
    %vm55 = vcmp.ne.f32.partialorder %v53, %v53
    %vm56 = vcmp.ne.f32.partialorder %v54, %v54
    %v57 = vsel %vm55, 0.0, %v53
    %v58 = vsel %vm56, 0.0, %v54
    %v59 = vadd.f32 %v57, %v58
    %60 = vst [vmem:[#allocation7] sm:$0xff] %v59
    %v61 = vadd.f32 %v49, %v50
    %62 = vst [vmem:[#allocation8] sm:$0xff] %v61
    // Predicated region
    $region18: #{tpu_custom_call.1} parent=1 // pred_check
      _
    $region19: #{tpu_custom_call.1} parent=1 // pred_check_branch
      %64 = sbr.rel (0) target = $region21
    $region20: #{tpu_custom_call.1} parent=1 // pred_region
      %s66 = ssub.s32 128, 128
      %67 = vsyncadd [#allocation4], %s66
      %s69 = sshll.u32 [#allocation7], 4
      %s70 = int_to_ptr.vmem [resolvable:$true] %s69
      %72 = dma.vmem_to_hbm [thread:$0]  %s70, 128, %s2, [#allocation4]
    $region21: #{tpu_custom_call.1} parent=1 // pred_fallthru
      _
    // Predicated region
    $region22: #{tpu_custom_call.1} parent=1 // pred_check
      _
    $region23: #{tpu_custom_call.1} parent=1 // pred_check_branch
      %74 = sbr.rel (0) target = $region25
    $region24: #{tpu_custom_call.1} parent=1 // pred_region
      %s76 = ssub.s32 128, 128
      %77 = vsyncadd [#allocation9], %s76
      %s79 = sshll.u32 [#allocation8], 4
      %s80 = int_to_ptr.vmem [resolvable:$true] %s79
      %82 = dma.vmem_to_hbm [thread:$0]  %s80, 128, %s3, [#allocation9]
    $region25: #{tpu_custom_call.1} parent=1 // pred_fallthru
      _
    // Predicated region
    $region26: #{tpu_custom_call.1} parent=1 // pred_check
      _
    $region27: #{tpu_custom_call.1} parent=1 // pred_check_branch
      %84 = sbr.rel (0) target = $region29
    $region28: #{tpu_custom_call.1} parent=1 // pred_region
      %85 = dma.done [#allocation4], 128
    $region29: #{tpu_custom_call.1} parent=1 // pred_fallthru
      _
    // Predicated region
    $region30: #{tpu_custom_call.1} parent=1 // pred_check
      _
    $region31: #{tpu_custom_call.1} parent=1 // pred_check_branch
      %87 = sbr.rel (0) target = $region33
    $region32: #{tpu_custom_call.1} parent=1 // pred_region
      %88 = dma.done [#allocation9], 128
    $region33: #{tpu_custom_call.1} parent=1 // pred_fallthru
      _
    %89 = vsyncpa [#allocation3], 1
    %90 = vsyncpa [#allocation6], 1
    %91 = vsyncpa [#allocation4], 1
    %92 = vsyncpa [#allocation9], 1

</llo_original>
